<compile_context>
chip_gen: v7x
topology: tpu7x:2x2x1
jax: 0.10.0
libtpu: 0.0.40
codegen_flags: <defaults>
</compile_context>

<pallas_src>
import jax
import jax.numpy as jnp
from jax.experimental import pallas as pl
from jax.experimental.pallas import tpu as pltpu


def valuenet_kernel(xt_ref, w1_ref, b1_ref, w2_ref, b2_ref, o_ref):
    # xt_ref: (S, TB)  -- batch on lanes
    # w1_ref: (H, S)   -- PyTorch fc1.weight layout, used as-is (no transpose)
    # b1_ref: (H, 1), w2_ref: (H, 1), b2_ref: SMEM (1,)
    # o_ref : (1, TB)  -- lane-dense output row
    S = xt_ref.shape[0]
    # fc1 as S unrolled VPU FMAs: h[k, b] = b1[k] + sum_s W1[k, s] * xT[s, b].
    # (H,1) column lane-broadcasts, (1,TB) row sublane-broadcasts -> (H, TB).
    h = b1_ref[...] + w1_ref[:, 0:1] * xt_ref[0:1, :]
    for s in range(1, S):
        h = h + w1_ref[:, s:s + 1] * xt_ref[s:s + 1, :]
    h = jnp.maximum(h, 0.0)  # relu at full lane occupancy
    # fc2: per-batch dot with w2 == sublane reduce over H -> (1, TB), already
    # in the output layout.  b2 is an SMEM scalar.
    v = jnp.sum(h * w2_ref[...], axis=0, keepdims=True) + b2_ref[0]
    o_ref[...] = v.astype(o_ref.dtype)


def prepare_params(w1, b1, w2, b2):
    """One-time layout fixup of the PyTorch parameters (hoisted out of forward).

    fc1.weight stays in its native (H, S) layout (the transposed compute needs
    no W1 transpose); biases/fc2 weight become (H, 1) columns; b2 stays a
    scalar routed through SMEM.
    """
    H, S = w1.shape
    return (
        jnp.asarray(w1, jnp.float32),                 # (H, S)
        jnp.asarray(b1, jnp.float32).reshape(H, 1),   # (H, 1)
        jnp.asarray(w2, jnp.float32).reshape(H, 1),   # (H, 1)
        jnp.asarray(b2, jnp.float32).reshape(1),      # (1,) scalar via SMEM
    )


def value_net_forward_t(x_t, params, *, tile_b=32768, core_parallel=False):
    """Forward pass on feature-major states x_t: (state_dim, B) f32 -> (B, 1).

    Preferred entry point: batch is already on the lane axis, so there is no
    transpose pass and no pad when tile_b divides B.
    core_parallel=True marks the batch grid axis CORE_PARALLEL (use on v7x).
    """
    w1, b1_c, w2_c, b2_s = params
    H, S = w1.shape
    S_x, B = x_t.shape
    assert S_x == S, "x_t must be (state_dim, B)"

    if B <= tile_b:
        # Single tile: block == full array dims, so any B is legal (masked
        # lane stores for the tail vreg) and no padding is needed at all.
        TB, num_tiles, B_pad = B, 1, B
    else:
        TB = tile_b  # multiple of 128 -> lane-aligned blocks, unmasked stores
        num_tiles = pl.cdiv(B, TB)
        B_pad = num_tiles * TB
        if B_pad != B:
            # Pad only up to the next tile multiple; padded columns produce
            # garbage values that are sliced off below.
            x_t = jnp.pad(x_t, ((0, 0), (0, B_pad - B)))

    dim_sem = (pltpu.CORE_PARALLEL if core_parallel else pltpu.PARALLEL,)

    out = pl.pallas_call(
        valuenet_kernel,
        out_shape=jax.ShapeDtypeStruct((1, B_pad), jnp.float32),
        grid=(num_tiles,),
        in_specs=[
            # Streamed lane-dense x^T tiles (double-buffered by the pipeline).
            pl.BlockSpec((S, TB), lambda i: (0, i)),
            # Tiny weights: constant block index -> VMEM-resident across steps.
            pl.BlockSpec((H, S), lambda i: (0, 0)),
            pl.BlockSpec((H, 1), lambda i: (0, 0)),
            pl.BlockSpec((H, 1), lambda i: (0, 0)),
            # fc2 bias as an SMEM scalar (no padded VMEM vreg tile, no DMA).
            pl.BlockSpec(memory_space=pltpu.MemorySpace.SMEM),
        ],
        # Lane-dense output rows: (1, TB) per grid step.
        out_specs=pl.BlockSpec((1, TB), lambda i: (0, i)),
        compiler_params=pltpu.CompilerParams(
            dimension_semantics=dim_sem,
            # ~20-25 MiB peak at TB=32768; 40 MiB clears v5e's 16 MiB scoped
            # default and stays under v7x's 64 MiB physical VMEM.
            vmem_limit_bytes=40 * 1024 * 1024,
        ),
    )(x_t, w1, b1_c, w2_c, b2_s)

    # (1, B_pad) lane-major row -> (B, 1) column, dropping padded tail lanes.
    return out.reshape(B_pad, 1)[:B]


def value_net_forward(x, params, *, tile_b=32768, core_parallel=False):
    """PyTorch-layout entry point: x (B, state_dim) f32 -> (B, 1) f32.

    Does one relayout pass (x -> x^T) so the kernel sees batch on lanes.
    Callers that can keep states feature-major should use value_net_forward_t.
    """
    return value_net_forward_t(x.T, params, tile_b=tile_b,
                               core_parallel=core_parallel)


def init_params(key, state_dim, hidden_dim):
    """Deterministic init mimicking torch.nn.Linear default (+-1/sqrt(fan_in)),
    in the original PyTorch (out, in) layout."""
    k1, k2, k3, k4 = jax.random.split(key, 4)
    lim1 = 1.0 / jnp.sqrt(jnp.float32(state_dim))
    lim2 = 1.0 / jnp.sqrt(jnp.float32(hidden_dim))
    w1 = jax.random.uniform(k1, (hidden_dim, state_dim), jnp.float32, -lim1, lim1)
    b1 = jax.random.uniform(k2, (hidden_dim,), jnp.float32, -lim1, lim1)
    w2 = jax.random.uniform(k3, (1, hidden_dim), jnp.float32, -lim2, lim2)
    b2 = jax.random.uniform(k4, (1,), jnp.float32, -lim2, lim2)
    return w1, b1, w2, b2


def _reference(x, w1, b1, w2, b2):
    return jnp.maximum(x @ w1.T + b1, 0.0) @ w2.T + b2


if __name__ == "__main__":
    state_dim, hidden_dim, batch = 4, 32, 8
    key = jax.random.PRNGKey(0)
    kx, kp = jax.random.split(key)
    x = jax.random.normal(kx, (batch, state_dim), jnp.float32)
    w1, b1, w2, b2 = init_params(kp, state_dim, hidden_dim)
    params = prepare_params(w1, b1, w2, b2)   # one-time layout fixup

    fwd = jax.jit(value_net_forward, static_argnames=("tile_b", "core_parallel"))
    fwd_t = jax.jit(value_net_forward_t, static_argnames=("tile_b", "core_parallel"))

    # 1) Small batch: single tile, block == full array dims.
    out = jax.block_until_ready(fwd(x, params))
    ref = _reference(x, w1, b1, w2, b2)
    assert out.shape == (batch, 1)
    assert jnp.allclose(out, ref, atol=1e-5, rtol=1e-5)

    # 2) Feature-major entry point (no transpose pass in the wrapper).
    out_t = jax.block_until_ready(fwd_t(x.T, params))
    assert jnp.allclose(out_t, ref, atol=1e-5, rtol=1e-5)

    # 3) Tiled + ragged path with a small tile override: 3 grid steps, padded tail.
    b_mid = 600
    xm = jax.random.normal(jax.random.PRNGKey(1), (b_mid, state_dim), jnp.float32)
    outm = jax.block_until_ready(fwd(xm, params, tile_b=256))
    refm = _reference(xm, w1, b1, w2, b2)
    assert outm.shape == (b_mid, 1)
    assert jnp.allclose(outm, refm, atol=1e-5, rtol=1e-5)

    # 4) Large batch on the default TB=32768 tile: 2 grid steps, ragged tail.
    b_big = 40_000
    xb = jax.random.normal(jax.random.PRNGKey(2), (b_big, state_dim), jnp.float32)
    outb = jax.block_until_ready(fwd(xb, params))
    refb = _reference(xb, w1, b1, w2, b2)
    assert outb.shape == (b_big, 1)
    assert jnp.allclose(outb, refb, atol=1e-4, rtol=1e-4)

    print("KERNEL_OK")
</pallas_src>

<mosaic_0001>
module attributes {stable_mosaic.version = 11 : i64} {
  func.func @valuenet_kernel(%arg0: i32, %arg1: memref<4x8xf32, #tpu.memory_space<vmem>>, %arg2: memref<32x4xf32, #tpu.memory_space<vmem>>, %arg3: memref<32x1xf32, #tpu.memory_space<vmem>>, %arg4: memref<32x1xf32, #tpu.memory_space<vmem>>, %arg5: memref<1xf32, #tpu.memory_space<smem>>, %arg6: memref<1x8xf32, #tpu.memory_space<vmem>>) attributes {dimension_semantics = [#tpu.dimension_semantics<parallel>], iteration_bounds = array<i64: 1>, scalar_prefetch = 0 : i64, scratch_operands = 0 : i64, tpu.core_type = #tpu.core_type<tc>, window_params = [{transform_indices = @transform_0, window_bounds = array<i64: 4, 8>}, {pipeline_mode = #tpu.pipeline_mode<synchronous>, transform_indices = @transform_1, window_bounds = array<i64: 32, 4>}, {pipeline_mode = #tpu.pipeline_mode<synchronous>, transform_indices = @transform_2, window_bounds = array<i64: 32, 1>}, {pipeline_mode = #tpu.pipeline_mode<synchronous>, transform_indices = @transform_3, window_bounds = array<i64: 32, 1>}, {transform_indices = @transform_4, window_bounds = array<i64: 1>}, {transform_indices = @transform_5, window_bounds = array<i64: 1, 8>}]} {
    %c0 = arith.constant 0 : index
    %c0_0 = arith.constant 0 : index
    %0 = vector.load %arg3[%c0, %c0_0] : memref<32x1xf32, #tpu.memory_space<vmem>>, vector<32x1xf32>
    %c0_1 = arith.constant 0 : index
    %c0_2 = arith.constant 0 : index
    %1 = vector.load %arg2[%c0_1, %c0_2] : memref<32x4xf32, #tpu.memory_space<vmem>>, vector<32x1xf32>
    %c0_3 = arith.constant 0 : index
    %c0_4 = arith.constant 0 : index
    %2 = vector.load %arg1[%c0_3, %c0_4] : memref<4x8xf32, #tpu.memory_space<vmem>>, vector<1x8xf32>
    %3 = vector.broadcast %1 : vector<32x1xf32> to vector<32x8xf32>
    %4 = vector.broadcast %2 : vector<1x8xf32> to vector<32x8xf32>
    %5 = arith.mulf %3, %4 : vector<32x8xf32>
    %6 = vector.broadcast %0 : vector<32x1xf32> to vector<32x8xf32>
    %7 = arith.addf %6, %5 : vector<32x8xf32>
    %c0_5 = arith.constant 0 : index
    %c1 = arith.constant 1 : index
    %8 = vector.load %arg2[%c0_5, %c1] : memref<32x4xf32, #tpu.memory_space<vmem>>, vector<32x1xf32>
    %c1_6 = arith.constant 1 : index
    %c0_7 = arith.constant 0 : index
    %9 = vector.load %arg1[%c1_6, %c0_7] : memref<4x8xf32, #tpu.memory_space<vmem>>, vector<1x8xf32>
    %10 = vector.broadcast %8 : vector<32x1xf32> to vector<32x8xf32>
    %11 = vector.broadcast %9 : vector<1x8xf32> to vector<32x8xf32>
    %12 = arith.mulf %10, %11 : vector<32x8xf32>
    %13 = arith.addf %7, %12 : vector<32x8xf32>
    %c0_8 = arith.constant 0 : index
    %c2 = arith.constant 2 : index
    %14 = vector.load %arg2[%c0_8, %c2] : memref<32x4xf32, #tpu.memory_space<vmem>>, vector<32x1xf32>
    %c2_9 = arith.constant 2 : index
    %c0_10 = arith.constant 0 : index
    %15 = vector.load %arg1[%c2_9, %c0_10] : memref<4x8xf32, #tpu.memory_space<vmem>>, vector<1x8xf32>
    %16 = vector.broadcast %14 : vector<32x1xf32> to vector<32x8xf32>
    %17 = vector.broadcast %15 : vector<1x8xf32> to vector<32x8xf32>
    %18 = arith.mulf %16, %17 : vector<32x8xf32>
    %19 = arith.addf %13, %18 : vector<32x8xf32>
    %c0_11 = arith.constant 0 : index
    %c3 = arith.constant 3 : index
    %20 = vector.load %arg2[%c0_11, %c3] : memref<32x4xf32, #tpu.memory_space<vmem>>, vector<32x1xf32>
    %c3_12 = arith.constant 3 : index
    %c0_13 = arith.constant 0 : index
    %21 = vector.load %arg1[%c3_12, %c0_13] : memref<4x8xf32, #tpu.memory_space<vmem>>, vector<1x8xf32>
    %22 = vector.broadcast %20 : vector<32x1xf32> to vector<32x8xf32>
    %23 = vector.broadcast %21 : vector<1x8xf32> to vector<32x8xf32>
    %24 = arith.mulf %22, %23 : vector<32x8xf32>
    %25 = arith.addf %19, %24 : vector<32x8xf32>
    %cst = arith.constant 0.000000e+00 : f32
    %26 = vector.broadcast %cst : f32 to vector<32x8xf32>
    %27 = arith.maximumf %25, %26 : vector<32x8xf32>
    %c0_14 = arith.constant 0 : index
    %c0_15 = arith.constant 0 : index
    %28 = vector.load %arg4[%c0_14, %c0_15] : memref<32x1xf32, #tpu.memory_space<vmem>>, vector<32x1xf32>
    %29 = vector.broadcast %28 : vector<32x1xf32> to vector<32x8xf32>
    %30 = arith.mulf %27, %29 : vector<32x8xf32>
    %cst_16 = arith.constant dense<0.000000e+00> : vector<8xf32>
    %31 = vector.multi_reduction <add>, %30, %cst_16 [0] : vector<32x8xf32> to vector<8xf32>
    %32 = vector.shape_cast %31 : vector<8xf32> to vector<1x8xf32>
    %c0_17 = arith.constant 0 : index
    %33 = memref.load %arg5[%c0_17] : memref<1xf32, #tpu.memory_space<smem>>
    %34 = vector.broadcast %33 : f32 to vector<1x8xf32>
    %35 = arith.addf %32, %34 : vector<1x8xf32>
    %c0_18 = arith.constant 0 : index
    %c0_19 = arith.constant 0 : index
    %36 = vector.load %arg6[%c0_18, %c0_19] : memref<1x8xf32, #tpu.memory_space<vmem>>, vector<1x8xf32>
    tpu.vector_store %arg6[%c0_18, %c0_19], %35 {strides = array<i32>} : memref<1x8xf32, #tpu.memory_space<vmem>>, vector<1x8xf32>,
    return
  }
  func.func @transform_0(%arg0: i32) -> (i32, i32) {
    %c0_i32 = arith.constant 0 : i32
    %c0_i32_0 = arith.constant 0 : i32
    return %c0_i32, %arg0 : i32, i32
  }
  func.func @transform_1(%arg0: i32) -> (i32, i32) {
    %c0_i32 = arith.constant 0 : i32
    %c0_i32_0 = arith.constant 0 : i32
    %c0_i32_1 = arith.constant 0 : i32
    return %c0_i32, %c0_i32_0 : i32, i32
  }
  func.func @transform_2(%arg0: i32) -> (i32, i32) {
    %c0_i32 = arith.constant 0 : i32
    %c0_i32_0 = arith.constant 0 : i32
    %c0_i32_1 = arith.constant 0 : i32
    return %c0_i32, %c0_i32_0 : i32, i32
  }
  func.func @transform_3(%arg0: i32) -> (i32, i32) {
    %c0_i32 = arith.constant 0 : i32
    %c0_i32_0 = arith.constant 0 : i32
    %c0_i32_1 = arith.constant 0 : i32
    return %c0_i32, %c0_i32_0 : i32, i32
  }
  func.func @transform_4(%arg0: i32) -> i32 {
    %c0_i32 = arith.constant 0 : i32
    %c0_i32_0 = arith.constant 0 : i32
    return %c0_i32 : i32
  }
  func.func @transform_5(%arg0: i32) -> (i32, i32) {
    %c0_i32 = arith.constant 0 : i32
    %c0_i32_0 = arith.constant 0 : i32
    return %c0_i32, %arg0 : i32, i32
  }
}

</mosaic_0001>

<llo_original>
// kernel: value_net_forward.1
$region0: #{value_net_forward.1}
  #allocation0 [shape = 'u32[]', space=smem, size = 0x4, offset = 0x4, fixed_abs, tag = 'smem constant byte address 0x4 - core index']
  #allocation1 [shape = 'u32[144,128]{1,0:T(1,128)}', space=vmem, size = 0x12000, scoped, tag = 'internal scratch']
  #allocation2 [shape = 'f32[1]{0:T(128)S(6)}', space=smem, size = 0x200, scoped, tag = 'scoped memory for value_net_forward.1']
  %s0 = inlined_call_operand.vmem [shape: f32[4,8], index: 0, kind: input, shape index: {}]
  %s1 = inlined_call_operand.vmem [shape: f32[32,4], index: 1, kind: input, shape index: {}]
  %s2 = inlined_call_operand.vmem [shape: f32[32,1], index: 2, kind: input, shape index: {}]
  %s3 = inlined_call_operand.vmem [shape: f32[32,1], index: 3, kind: input, shape index: {}]
  %s4 = inlined_call_operand.<no memory space> [shape: f32[1], index: 4, kind: input, shape index: {}]
  %s5 = inlined_call_operand.hbm [shape: f32[1,8], index: 5, kind: output, shape index: {}]
  %s6 = sld [smem:[#allocation0]]
  $region30: #{value_net_forward.1} parent=0
    _
  %s8 = ssub.s32 1, %s6
  %s9 = scalar_select 0, %s8, %s6
  %10 = sst [smem:[#allocation2]] %s4
  $region1: #{value_net_forward.1} parent=0
    #allocation3 [shape = 'u8[512]{0}', space=vmem, size = 0x400, scoped, tag = 'output window, operand 0, single buffered']
    #allocation4 [shape = 's32[1]{0}', space=sflag, size = 0x4, scoped, tag = 'scoped memory for value_net_forward.1']
    %11 = vsyncpa [#allocation4], 0
    // Predicated region
    $region2: #{value_net_forward.1} parent=1 // pred_check
      _
    $region3: #{value_net_forward.1} parent=1 // pred_check_branch
      %13 = sbr.rel (0) target = $region5
    $region4: #{value_net_forward.1} parent=1 // pred_region
      _
    $region5: #{value_net_forward.1} parent=1 // pred_fallthru
      _
    // Predicated region
    $region6: #{value_net_forward.1} parent=1 // pred_check
      _
    $region7: #{value_net_forward.1} parent=1 // pred_check_branch
      %15 = sbr.rel (0) target = $region9
    $region8: #{value_net_forward.1} parent=1 // pred_region
      _
    $region9: #{value_net_forward.1} parent=1 // pred_fallthru
      _
    // Predicated region
    $region10: #{value_net_forward.1} parent=1 // pred_check
      _
    $region11: #{value_net_forward.1} parent=1 // pred_check_branch
      %17 = sbr.rel (0) target = $region13
    $region12: #{value_net_forward.1} parent=1 // pred_region
      _
    $region13: #{value_net_forward.1} parent=1 // pred_fallthru
      _
    // Predicated region
    $region14: #{value_net_forward.1} parent=1 // pred_check
      _
    $region15: #{value_net_forward.1} parent=1 // pred_check_branch
      %19 = sbr.rel (0) target = $region17
    $region16: #{value_net_forward.1} parent=1 // pred_region
      _
    $region17: #{value_net_forward.1} parent=1 // pred_fallthru
      _
    // Predicated region
    $region18: #{value_net_forward.1} parent=1 // pred_check
      _
    $region19: #{value_net_forward.1} parent=1 // pred_check_branch
      %21 = sbr.rel (0) target = $region21
    $region20: #{value_net_forward.1} parent=1 // pred_region
      _
    $region21: #{value_net_forward.1} parent=1 // pred_fallthru
      _
    %v22 = vld [vmem:[%s2] sm:$0xff]
    %v23 = vld [vmem:[%s2 + $0x8] sm:$0xff]
    %v24 = vld [vmem:[%s2 + $0x10] sm:$0xff]
    %v25 = vld [vmem:[%s2 + $0x18] sm:$0xff]
    %v26 = vld [vmem:[%s1] sm:$0xff]
    %v27 = vld [vmem:[%s1 + $0x8] sm:$0xff]
    %v28 = vld [vmem:[%s1 + $0x10] sm:$0xff]
    %v29 = vld [vmem:[%s1 + $0x18] sm:$0xff]
    %v30 = vld [vmem:[%s0] sm:$0x1]
    %32 = vset.pattern.permute.xlu0 0
    %33 = vperm.xlu0 %32, %v26
    %v34 = vpop.permute.xlu0 %33
    %37 = vset.pattern.permute.xlu0 0
    %38 = vperm.xlu0 %37, %v27
    %v39 = vpop.permute.xlu0 %38
    %42 = vset.pattern.permute.xlu0 0
    %43 = vperm.xlu0 %42, %v28
    %v44 = vpop.permute.xlu0 %43
    %47 = vset.pattern.permute.xlu0 0
    %48 = vperm.xlu0 %47, %v29
    %v49 = vpop.permute.xlu0 %48
    %v51 = vlaneseq
    %v52 = vshrl.u32 %v51, 7
    %v53 = vsub.s32 0, %v52
    %v54 = vrot.slane %v30, %v53
    %v55 = vmul.f32 %v34, %v54
    %v56 = vmul.f32 %v39, %v54
    %v57 = vmul.f32 %v44, %v54
    %v58 = vmul.f32 %v49, %v54
    %60 = vset.pattern.permute.xlu0 0
    %61 = vperm.xlu0 %60, %v22
    %v62 = vpop.permute.xlu0 %61
    %65 = vset.pattern.permute.xlu0 0
    %66 = vperm.xlu0 %65, %v23
    %v67 = vpop.permute.xlu0 %66
    %70 = vset.pattern.permute.xlu0 0
    %71 = vperm.xlu0 %70, %v24
    %v72 = vpop.permute.xlu0 %71
    %75 = vset.pattern.permute.xlu0 0
    %76 = vperm.xlu0 %75, %v25
    %v77 = vpop.permute.xlu0 %76
    %v79 = vadd.f32 %v62, %v55
    %v80 = vadd.f32 %v67, %v56
    %v81 = vadd.f32 %v72, %v57
    %v82 = vadd.f32 %v77, %v58
    %v83 = vld [vmem:[%s0 + $0x1] sm:$0x1]
    %84 = vset.pattern.permute.xlu0 1
    %85 = vperm.xlu0 %84, %v26
    %v86 = vpop.permute.xlu0 %85
    %88 = vset.pattern.permute.xlu0 1
    %89 = vperm.xlu0 %88, %v27
    %v90 = vpop.permute.xlu0 %89
    %92 = vset.pattern.permute.xlu0 1
    %93 = vperm.xlu0 %92, %v28
    %v94 = vpop.permute.xlu0 %93
    %96 = vset.pattern.permute.xlu0 1
    %97 = vperm.xlu0 %96, %v29
    %v98 = vpop.permute.xlu0 %97
    %v100 = vlaneseq
    %v101 = vshrl.u32 %v100, 7
    %v102 = vsub.s32 0, %v101
    %v103 = vrot.slane %v83, %v102
    %v104 = vmul.f32 %v86, %v103
    %v105 = vmul.f32 %v90, %v103
    %v106 = vmul.f32 %v94, %v103
    %v107 = vmul.f32 %v98, %v103
    %v108 = vadd.f32 %v79, %v104
    %v109 = vadd.f32 %v80, %v105
    %v110 = vadd.f32 %v81, %v106
    %v111 = vadd.f32 %v82, %v107
    %v112 = vld [vmem:[%s0 + $0x2] sm:$0x1]
    %113 = vset.pattern.permute.xlu0 2
    %114 = vperm.xlu0 %113, %v26
    %v115 = vpop.permute.xlu0 %114
    %117 = vset.pattern.permute.xlu0 2
    %118 = vperm.xlu0 %117, %v27
    %v119 = vpop.permute.xlu0 %118
    %121 = vset.pattern.permute.xlu0 2
    %122 = vperm.xlu0 %121, %v28
    %v123 = vpop.permute.xlu0 %122
    %125 = vset.pattern.permute.xlu0 2
    %126 = vperm.xlu0 %125, %v29
    %v127 = vpop.permute.xlu0 %126
    %v129 = vlaneseq
    %v130 = vshrl.u32 %v129, 7
    %v131 = vsub.s32 0, %v130
    %v132 = vrot.slane %v112, %v131
    %v133 = vmul.f32 %v115, %v132
    %v134 = vmul.f32 %v119, %v132
    %v135 = vmul.f32 %v123, %v132
    %v136 = vmul.f32 %v127, %v132
    %v137 = vadd.f32 %v108, %v133
    %v138 = vadd.f32 %v109, %v134
    %v139 = vadd.f32 %v110, %v135
    %v140 = vadd.f32 %v111, %v136
    %v141 = vld [vmem:[%s0 + $0x3] sm:$0x1]
    %142 = vset.pattern.permute.xlu0 3
    %143 = vperm.xlu0 %142, %v26
    %v144 = vpop.permute.xlu0 %143
    %146 = vset.pattern.permute.xlu0 3
    %147 = vperm.xlu0 %146, %v27
    %v148 = vpop.permute.xlu0 %147
    %150 = vset.pattern.permute.xlu0 3
    %151 = vperm.xlu0 %150, %v28
    %v152 = vpop.permute.xlu0 %151
    %154 = vset.pattern.permute.xlu0 3
    %155 = vperm.xlu0 %154, %v29
    %v156 = vpop.permute.xlu0 %155
    %v158 = vlaneseq
    %v159 = vshrl.u32 %v158, 7
    %v160 = vsub.s32 0, %v159
    %v161 = vrot.slane %v141, %v160
    %v162 = vmul.f32 %v144, %v161
    %v163 = vmul.f32 %v148, %v161
    %v164 = vmul.f32 %v152, %v161
    %v165 = vmul.f32 %v156, %v161
    %v166 = vadd.f32 %v137, %v162
    %v167 = vadd.f32 %v138, %v163
    %v168 = vadd.f32 %v139, %v164
    %v169 = vadd.f32 %v140, %v165
    %v170 = vmax.f32 %v166, 0.0
    %v171 = vmax.f32 %v167, 0.0
    %v172 = vmax.f32 %v168, 0.0
    %v173 = vmax.f32 %v169, 0.0
    %v174 = vld [vmem:[%s3] sm:$0xff]
    %v175 = vld [vmem:[%s3 + $0x8] sm:$0xff]
    %v176 = vld [vmem:[%s3 + $0x10] sm:$0xff]
    %v177 = vld [vmem:[%s3 + $0x18] sm:$0xff]
    %179 = vset.pattern.permute.xlu0 0
    %180 = vperm.xlu0 %179, %v174
    %v181 = vpop.permute.xlu0 %180
    %184 = vset.pattern.permute.xlu0 0
    %185 = vperm.xlu0 %184, %v175
    %v186 = vpop.permute.xlu0 %185
    %189 = vset.pattern.permute.xlu0 0
    %190 = vperm.xlu0 %189, %v176
    %v191 = vpop.permute.xlu0 %190
    %194 = vset.pattern.permute.xlu0 0
    %195 = vperm.xlu0 %194, %v177
    %v196 = vpop.permute.xlu0 %195
    %v198 = vmul.f32 %v170, %v181
    %v199 = vmul.f32 %v171, %v186
    %v200 = vmul.f32 %v172, %v191
    %v201 = vmul.f32 %v173, %v196
    %vm202 = vcmask 64512
    %v203 = vsel %vm202, %v198, 0.0
    %v204 = vsel %vm202, %v199, 0.0
    %v205 = vadd.f32 %v203, %v204
    %v206 = vsel %vm202, %v200, 0.0
    %v207 = vadd.f32 %v205, %v206
    %v208 = vsel %vm202, %v201, 0.0
    %v209 = vadd.f32 %v207, %v208
    %v210 = vrot.slane %v209, 4
    %v211 = vadd.f32 %v209, %v210
    %v212 = vrot.slane %v211, 2
    %v213 = vadd.f32 %v211, %v212
    %v214 = vrot.slane %v213, 1
    %v215 = vadd.f32 %v213, %v214
    %s216 = sld [smem:[#allocation2]]
    %v217 = vstv %s216
    %v218 = vadd.f32 %v215, %v217
    %vm219 = vcmask 57344
    %220 = vst.msk [vmem:[#allocation3] sm:$0x1] %vm219, %v218
    // Predicated region
    $region22: #{value_net_forward.1} parent=1 // pred_check
      _
    $region23: #{value_net_forward.1} parent=1 // pred_check_branch
      %222 = sbr.rel (0) target = $region25
    $region24: #{value_net_forward.1} parent=1 // pred_region
      %s224 = ssub.s32 16, 16
      %225 = vsyncadd [#allocation4], %s224
      %s227 = sshll.u32 [#allocation3], 4
      %s228 = int_to_ptr.vmem [resolvable:$true] %s227
      %230 = dma.vmem_to_hbm [thread:$0]  %s228, 16, %s5, [#allocation4]
    $region25: #{value_net_forward.1} parent=1 // pred_fallthru
      _
    // Predicated region
    $region26: #{value_net_forward.1} parent=1 // pred_check
      _
    $region27: #{value_net_forward.1} parent=1 // pred_check_branch
      %232 = sbr.rel (0) target = $region29
    $region28: #{value_net_forward.1} parent=1 // pred_region
      %233 = dma.done [#allocation4], 16
    $region29: #{value_net_forward.1} parent=1 // pred_fallthru
      _
    %234 = vsyncpa [#allocation4], 1

</llo_original>
